<compile_context>
chip_gen: v5e
topology: v5e:2x2
jax: 0.10.0
libtpu: 0.0.40
codegen_flags: <defaults>
</compile_context>

<pallas_src>
import functools

import jax
import jax.numpy as jnp
from jax.experimental import pallas as pl
from jax.experimental.pallas import tpu as pltpu


def _pool_lanes_kernel(x_ref, o_ref, *, num_maps, hw, inv):
    # x_ref: (T, num_maps*HW) VMEM tile; o_ref: (T, HW) VMEM tile; HW % 128 == 0.
    # Reduce over num_maps via aligned static lane-slice adds, f32 accumulate.
    acc = x_ref[:, 0:hw].astype(jnp.float32)
    for m in range(1, num_maps):
        acc = acc + x_ref[:, m * hw:(m + 1) * hw].astype(jnp.float32)
    o_ref[...] = (acc * inv).astype(o_ref.dtype)


def _pool_maps_axis_kernel(x_ref, o_ref, *, inv):
    # Fallback for HW % 128 != 0.
    # x_ref: (T, num_maps, HW) VMEM tile; o_ref: (T, HW) VMEM tile.
    acc = jnp.sum(x_ref[...].astype(jnp.float32), axis=1)
    o_ref[...] = (acc * inv).astype(o_ref.dtype)


def classwise_pool(x, num_maps, *, block_rows=None):
    """Pallas TPU implementation of ClassWisePool forward.

    x: (B, C, H, W) array, C % num_maps == 0.
    Returns (B, C // num_maps, H, W); float inputs keep their dtype, integer
    inputs yield float32 (true-divide semantics, matching torch's `/`).
    """
    B, C, H, W = x.shape
    assert C % num_maps == 0, (
        "The number of channels has to be a multiple of the number of maps per class"
    )
    num_outputs = C // num_maps
    HW = H * W
    rows = B * num_outputs
    row_width = num_maps * HW

    in_dtype = x.dtype
    out_dtype = in_dtype if jnp.issubdtype(in_dtype, jnp.floating) else jnp.float32
    in_bytes = jnp.dtype(in_dtype).itemsize
    out_bytes = jnp.dtype(out_dtype).itemsize

    lane_aligned = (HW % 128 == 0)

    if block_rows is None:
        # ~4 MiB per step measured against f32 temporaries (kernel accumulates
        # in f32), so narrow input dtypes don't inflate the VMEM footprint.
        target_bytes = 4 * 1024 * 1024
        t = target_bytes // max(1, row_width * max(in_bytes, 4))
        t = max(8, (t // 8) * 8)
        # Keep >= 4 grid steps when possible: v7x has 2 TCs and a 1-2 step grid
        # leaves one idle and never warms the pipeline.  v5e/v6e unaffected.
        min_steps = 4
        t_steps = max(8, ((pl.cdiv(rows, min_steps) + 7) // 8) * 8)
        block_rows = min(t, t_steps)
    if block_rows >= rows:
        block_rows = rows  # full extent is always a legal block shape

    grid = (pl.cdiv(rows, block_rows),)
    inv = 1.0 / num_maps

    if lane_aligned:
        # Lane-folded contiguous 2-D view (free reshape).
        x2 = x.reshape(rows, row_width)
        kernel = functools.partial(_pool_lanes_kernel, num_maps=num_maps, hw=HW, inv=inv)
        in_specs = [pl.BlockSpec((block_rows, row_width), lambda i: (i, 0))]
    else:
        # Generic fallback: reduce num_maps as an explicit axis.  Correct but
        # slower (output last dim not a 128 multiple -> masked stores).
        x2 = x.reshape(rows, num_maps, HW)
        kernel = functools.partial(_pool_maps_axis_kernel, inv=inv)
        in_specs = [pl.BlockSpec((block_rows, num_maps, HW), lambda i: (i, 0, 0))]

    out = pl.pallas_call(
        kernel,
        out_shape=jax.ShapeDtypeStruct((rows, HW), out_dtype),
        grid_spec=pltpu.PrefetchScalarGridSpec(
            num_scalar_prefetch=0,
            grid=grid,
            in_specs=in_specs,
            out_specs=pl.BlockSpec((block_rows, HW), lambda i: (i, 0)),
        ),
        compiler_params=pltpu.CompilerParams(
            dimension_semantics=("parallel",),  # shards grid across TCs on v7x
            vmem_limit_bytes=48 * 1024 * 1024,
        ),
        cost_estimate=pl.CostEstimate(
            flops=rows * num_maps * HW,
            transcendentals=0,
            bytes_accessed=rows * row_width * in_bytes + rows * HW * out_bytes,
        ),
    )(x2)

    return out.reshape(B, num_outputs, H, W)


def classwise_pool_ref(x, num_maps):
    B, C, H, W = x.shape
    num_outputs = C // num_maps
    xf = x if jnp.issubdtype(x.dtype, jnp.floating) else x.astype(jnp.float32)
    return jnp.sum(xf.reshape(B, num_outputs, num_maps, H, W), axis=2) / num_maps


if __name__ == "__main__":
    key = jax.random.PRNGKey(0)

    # 1) Primary small test: B=2, C=4, num_maps=2, 16x16 spatial (lane-aligned path).
    num_maps = 2
    B, C, H, W = 2, 4, 16, 16
    x = jax.random.normal(key, (B, C, H, W), dtype=jnp.float32)
    y = jax.block_until_ready(classwise_pool(x, num_maps))
    assert y.shape == (B, C // num_maps, H, W)
    assert jnp.allclose(y, classwise_pool_ref(x, num_maps), atol=1e-6, rtol=1e-6)

    # 2) num_maps > 2 unrolled lane reduction.
    x2 = jax.random.normal(jax.random.PRNGKey(1), (2, 8, 16, 16), dtype=jnp.float32)
    y2 = jax.block_until_ready(classwise_pool(x2, 4))
    assert y2.shape == (2, 2, 16, 16)
    assert jnp.allclose(y2, classwise_pool_ref(x2, 4), atol=1e-6, rtol=1e-6)

    # 3) Integer input: no wrapper cast, kernel upcasts in-VMEM, float32 output.
    x3 = jax.random.randint(jax.random.PRNGKey(2), (2, 6, 16, 16), -8, 8, dtype=jnp.int32)
    y3 = jax.block_until_ready(classwise_pool(x3, 3))
    assert y3.dtype == jnp.float32 and y3.shape == (2, 2, 16, 16)
    assert jnp.allclose(y3, classwise_pool_ref(x3, 3), atol=1e-6, rtol=1e-6)

    # 4) HW not a multiple of 128 (14x14 feature maps) -> fallback path.
    x4 = jax.random.normal(jax.random.PRNGKey(3), (2, 4, 14, 14), dtype=jnp.float32)
    y4 = jax.block_until_ready(classwise_pool(x4, 2))
    assert y4.shape == (2, 2, 14, 14)
    assert jnp.allclose(y4, classwise_pool_ref(x4, 2), atol=1e-6, rtol=1e-6)

    print("KERNEL_OK")
</pallas_src>

<mosaic_0001>
module attributes {stable_mosaic.version = 11 : i64} {
  func.func @_pool_lanes_kernel(%arg0: i32, %arg1: memref<4x512xf32, #tpu.memory_space<vmem>>, %arg2: memref<4x256xf32, #tpu.memory_space<vmem>>) attributes {dimension_semantics = [#tpu.dimension_semantics<parallel>], iteration_bounds = array<i64: 1>, scalar_prefetch = 0 : i64, scratch_operands = 0 : i64, tpu.core_type = #tpu.core_type<tc>, window_params = [{transform_indices = @transform_0, window_bounds = array<i64: 4, 512>}, {transform_indices = @transform_1, window_bounds = array<i64: 4, 256>}]} {
    %c0 = arith.constant 0 : index
    %c0_0 = arith.constant 0 : index
    %0 = vector.load %arg1[%c0, %c0_0] : memref<4x512xf32, #tpu.memory_space<vmem>>, vector<4x256xf32>
    %c0_1 = arith.constant 0 : index
    %c256 = arith.constant 256 : index
    %1 = vector.load %arg1[%c0_1, %c256] : memref<4x512xf32, #tpu.memory_space<vmem>>, vector<4x256xf32>
    %2 = arith.addf %0, %1 : vector<4x256xf32>
    %cst = arith.constant 5.000000e-01 : f32
    %3 = vector.broadcast %cst : f32 to vector<4x256xf32>
    %4 = arith.mulf %2, %3 : vector<4x256xf32>
    %c0_2 = arith.constant 0 : index
    %c0_3 = arith.constant 0 : index
    %5 = vector.load %arg2[%c0_2, %c0_3] : memref<4x256xf32, #tpu.memory_space<vmem>>, vector<4x256xf32>
    tpu.vector_store %arg2[%c0_2, %c0_3], %4 {strides = array<i32>} : memref<4x256xf32, #tpu.memory_space<vmem>>, vector<4x256xf32>,
    return
  }
  func.func @transform_0(%arg0: i32) -> (i32, i32) {
    %c0_i32 = arith.constant 0 : i32
    %c0_i32_0 = arith.constant 0 : i32
    return %arg0, %c0_i32 : i32, i32
  }
  func.func @transform_1(%arg0: i32) -> (i32, i32) {
    %c0_i32 = arith.constant 0 : i32
    %c0_i32_0 = arith.constant 0 : i32
    return %arg0, %c0_i32 : i32, i32
  }
}

</mosaic_0001>

<llo_original>
// kernel: tpu_custom_call.1
$region0: #{tpu_custom_call.1}
  #allocation0 [shape = 'u32[]', space=smem, size = 0x4, offset = 0x4, fixed_abs, tag = 'smem constant byte address 0x4 - core index']
  #allocation1 [shape = 'u32[72,128]{1,0:T(1,128)}', space=vmem, size = 0x9000, scoped, tag = 'internal scratch']
  %s0 = inlined_call_operand.hbm [shape: f32[4,512], index: 0, kind: input, shape index: {}]
  %s1 = inlined_call_operand.hbm [shape: f32[4,256], index: 1, kind: output, shape index: {}]
  %s2 = sld [smem:[#allocation0]]
  $region18: #{tpu_custom_call.1} parent=0
    _
  %s4 = ssub.s32 1, %s2
  %s5 = scalar_select 0, %s4, %s2
  $region1: #{tpu_custom_call.1} parent=0
    #allocation2 [shape = 'u8[8192]{0}', space=vmem, size = 0x2000, scoped, tag = 'input window, operand 0, single buffered']
    #allocation3 [shape = 's32[1]{0}', space=sflag, size = 0x4, scoped, tag = 'scoped memory for tpu_custom_call.1']
    #allocation4 [shape = 's32[1]{0}', space=sflag, size = 0x4, scoped, tag = 'scoped memory for tpu_custom_call.1']
    #allocation5 [shape = 'u8[4096]{0}', space=vmem, size = 0x1000, scoped, tag = 'output window, operand 0, single buffered']
    %6 = vsyncpa [#allocation3], 0
    %7 = vsyncpa [#allocation4], 0
    // Predicated region
    $region2: #{tpu_custom_call.1} parent=1 // pred_check
      _
    $region3: #{tpu_custom_call.1} parent=1 // pred_check_branch
      %9 = sbr.rel (0) target = $region5
    $region4: #{tpu_custom_call.1} parent=1 // pred_region
      %11 = vsyncadd [#allocation3], 0
      %s13 = sshll.u32 %s0, 4
      %s14 = int_to_ptr.hbm [resolvable:$true] %s13
      %s15 = sshll.u32 [#allocation2], 4
      %s16 = int_to_ptr.vmem [resolvable:$true] %s15
      %18 = dma.hbm_to_vmem [thread:$0]  %s14, 256, %s16, [#allocation3]
    $region5: #{tpu_custom_call.1} parent=1 // pred_fallthru
      _
    // Predicated region
    $region6: #{tpu_custom_call.1} parent=1 // pred_check
      _
    $region7: #{tpu_custom_call.1} parent=1 // pred_check_branch
      %20 = sbr.rel (0) target = $region9
    $region8: #{tpu_custom_call.1} parent=1 // pred_region
      %22 = dma.done [#allocation3], 256
    $region9: #{tpu_custom_call.1} parent=1 // pred_fallthru
      _
    %v23 = vld [vmem:[#allocation2] sm:$0xff]
    %v24 = vld [vmem:[#allocation2 + $0x8] sm:$0xff]
    %v25 = vadd.f32 %v23, %v24
    %v26 = vmul.f32 %v25, 0.5
    %27 = vst [vmem:[#allocation5] sm:$0xff] %v26
    // Predicated region
    $region10: #{tpu_custom_call.1} parent=1 // pred_check
      _
    $region11: #{tpu_custom_call.1} parent=1 // pred_check_branch
      %29 = sbr.rel (0) target = $region13
    $region12: #{tpu_custom_call.1} parent=1 // pred_region
      %31 = vsyncadd [#allocation4], 0
      %s33 = sshll.u32 [#allocation5], 4
      %s34 = int_to_ptr.vmem [resolvable:$true] %s33
      %s35 = sshll.u32 %s1, 4
      %s36 = int_to_ptr.hbm [resolvable:$true] %s35
      %38 = dma.vmem_to_hbm [thread:$0]  %s34, 128, %s36, [#allocation4]
    $region13: #{tpu_custom_call.1} parent=1 // pred_fallthru
      _
    // Predicated region
    $region14: #{tpu_custom_call.1} parent=1 // pred_check
      _
    $region15: #{tpu_custom_call.1} parent=1 // pred_check_branch
      %40 = sbr.rel (0) target = $region17
    $region16: #{tpu_custom_call.1} parent=1 // pred_region
      %42 = dma.done [#allocation4], 128
    $region17: #{tpu_custom_call.1} parent=1 // pred_fallthru
      _
    %43 = vsyncpa [#allocation3], 1
    %44 = vsyncpa [#allocation4], 1

</llo_original>
